<compile_context>
chip_gen: v7x
topology: tpu7x:2x2x1
jax: 0.10.0
libtpu: 0.0.40
codegen_flags: <defaults>
</compile_context>

<pallas_src>
import jax
import jax.numpy as jnp
from jax.experimental import pallas as pl
from jax.experimental.pallas import tpu as pltpu

CONV_KSIZES = (2, 3, 4, 5)     # the module's four Conv1d kernel sizes
LRELU_SLOPE = 0.1              # nn.LeakyReLU(negative_slope=0.1)
VMEM_BUDGET = 24 * 1024 * 1024  # conservative per-step VMEM target (fits v5e/v6e/v7x)


def _round_up(x, m):
    return (x + m - 1) // m * m


def _leaky_relu(x):
    return jnp.maximum(x, LRELU_SLOPE * x)


def twitter_embedding_kernel(emb_ref, wc_ref, bc_ref, mask_ref,
                             fc1w_ref, fc1b_ref, fc2w_ref, fc2b_ref, out_ref):
    # emb_ref block: (TB, Lp, D) bf16 where Lp = lout + KMAX - 1 (already zero-padded)
    TB, Lp, D = emb_ref.shape
    KMAX, _, KP = wc_ref.shape          # KP = conv channels padded to 128 lanes
    lout = mask_ref.shape[0]            # longest conv output, rounded up to 8

    # All four Conv1d layers via KMAX accumulated matmuls (no im2col slab):
    #   conv[b, t, c] = sum_tau sum_d emb[b, t+tau, d] * wc[tau, d, c]
    acc = jnp.zeros((TB * lout, KP), jnp.float32)
    for tau in range(KMAX):
        x_tau = emb_ref[:, tau:tau + lout, :].reshape(TB * lout, D)
        acc = acc + jnp.dot(x_tau, wc_ref[tau],
                            preferred_element_type=jnp.float32)

    conv = acc.reshape(TB, lout, KP) + bc_ref[...]          # f32 + f32 bias
    conv = _leaky_relu(conv)

    # Precomputed mask: 0 where timestep is valid for the channel's conv (and for
    # padded channel groups, so they pool to exactly 0), -1e30 otherwise.
    pooled = jnp.max(conv + mask_ref[...], axis=1)          # (TB, KP)

    # fc1 + LeakyReLU   (padded pooled channels hit zero rows of fc1w)
    h = jnp.dot(pooled.astype(fc1w_ref.dtype), fc1w_ref[...],
                preferred_element_type=jnp.float32) + fc1b_ref[...]
    h = _leaky_relu(h)
    # TODO(synk): training-mode Dropout (pltpu.prng_seed/prng_random_bits mask) not implemented;
    # eval-mode Dropout is the identity.

    # fc2 (output channels zero-padded to 128 lanes; wrapper slices to n_class)
    o = jnp.dot(h.astype(fc2w_ref.dtype), fc2w_ref[...],
                preferred_element_type=jnp.float32) + fc2b_ref[...]
    out_ref[...] = o.astype(out_ref.dtype)


def prepare_twitter_embedding_params(embed_table, params):
    """One-time parameter consolidation (do NOT call per forward).
    params = (conv_ws, conv_bs, fc1w, fc1b, fc2w, fc2b) in PyTorch layouts:
        conv_ws[i]: (K, D, ksize_i), conv_bs[i]: (K,)
        fc1w: (128, 4K), fc1b: (128,), fc2w: (C, 128), fc2b: (C,)"""
    conv_ws, conv_bs, fc1w, fc1b, fc2w, fc2b = params
    D = embed_table.shape[1]
    K = conv_ws[0].shape[0]
    H = fc1w.shape[0]
    C = fc2w.shape[0]
    KMAX = max(CONV_KSIZES)
    K4 = K * len(CONV_KSIZES)
    KP = max(_round_up(K4, 128), 128)       # conv channels padded to full lanes
    C_PAD = _round_up(C, 128)

    # Stacked conv weights: (KMAX taps, D, KP), zero-padded taps & channels.
    wc = jnp.zeros((KMAX, D, KP), jnp.float32)
    for g, (ks, w) in enumerate(zip(CONV_KSIZES, conv_ws)):
        # torch Conv1d weight (K, D, ks) -> (ks, D, K)
        wc = wc.at[:ks, :, g * K:(g + 1) * K].set(jnp.transpose(w, (2, 1, 0)))
    wc = wc.astype(jnp.bfloat16)

    bc = jnp.zeros((1, KP), jnp.float32).at[0, :K4].set(jnp.concatenate(conv_bs))

    w1 = jnp.zeros((KP, H), jnp.float32).at[:K4, :].set(
        jnp.transpose(fc1w)).astype(jnp.bfloat16)                     # (KP, H)
    b1 = fc1b.reshape(1, H).astype(jnp.float32)
    w2 = jnp.zeros((H, C_PAD), jnp.float32).at[:, :C].set(
        jnp.transpose(fc2w)).astype(jnp.bfloat16)                     # (H, C_PAD)
    b2 = jnp.zeros((1, C_PAD), jnp.float32).at[0, :C].set(fc2b)

    # bf16 embedding table cached once (hoisted out of the per-call path).
    embed_bf16 = embed_table.astype(jnp.bfloat16)
    return (embed_bf16, wc, bc, w1, b1, w2, b2, K, C)


def twitter_embedding_forward(token_ids, packed, *, tb=128):
    """token_ids: (N, L) int32; packed: output of prepare_twitter_embedding_params.
    Returns logits (N, n_class) float32."""
    embed_bf16, wc, bc, w1, b1, w2, b2, K, C = packed
    N, L = token_ids.shape
    KMAX, D, KP = wc.shape
    C_PAD = w2.shape[1]
    K4 = K * len(CONV_KSIZES)

    if L < KMAX:
        # PyTorch would raise on an empty conv output; mirror that explicitly.
        raise ValueError(f"sentence length L={L} must be >= {KMAX}")

    lout = _round_up(L - 1, 8)              # longest conv output (k=2), sublane-aligned
    Lp = lout + KMAX - 1                    # padded time extent used by the kernel

    # Valid-time / padded-channel mask (batch-independent, built once per call).
    t_idx = jnp.arange(lout, dtype=jnp.int32)[:, None]
    col = jnp.arange(KP, dtype=jnp.int32)[None, :]
    ksz = col // K + 2                      # conv group g=col//K has kernel size g+2
    valid = (t_idx <= (L - ksz)) | (col >= K4)   # padded channel groups -> mask 0 -> pool to 0
    mask = jnp.where(valid, 0.0, -1e30).astype(jnp.float32)

    # ---- batch tile selection (VMEM budget + >=2 grid steps for dual-TC chips) ----
    n8 = _round_up(N, 8)
    per_sent = (Lp * D * 2 * 2          # bf16 input block, double-buffered
                + lout * KP * 4         # f32 conv accumulator
                + lout * KP * 4         # f32 conv epilogue value
                + lout * D * 2)         # one bf16 tap slice
    cap = max(8, (VMEM_BUDGET // max(per_sent, 1)) // 8 * 8)
    TB = min(tb, cap, n8)
    if n8 >= 16:
        TB = min(TB, _round_up((n8 + 1) // 2, 8))   # keep grid >= 2 when batch allows
    TB = max(TB, 8)
    N_pad = _round_up(N, TB)

    ids = token_ids.astype(jnp.int32)
    if N_pad != N:  # pad with token 0 rows (discarded on output slice)
        ids = jnp.concatenate([ids, jnp.zeros((N_pad - N, L), ids.dtype)], axis=0)

    # Embedding lookup in bf16 + one-time time-axis zero pad (outside the kernel).
    # TODO(synk): gather still round-trips HBM; in-kernel gather / input fusion not applied.
    embeds = jnp.take(embed_bf16, ids, axis=0)                  # (N_pad, L, D) bf16
    embeds = jnp.pad(embeds, ((0, 0), (0, Lp - L), (0, 0)))     # (N_pad, Lp, D)

    out = pl.pallas_call(
        twitter_embedding_kernel,
        out_shape=jax.ShapeDtypeStruct((N_pad, C_PAD), jnp.float32),
        grid=(N_pad // TB,),
        in_specs=[
            pl.BlockSpec((TB, Lp, D), lambda bi: (bi, 0, 0)),   # per-tile embeddings
            pl.BlockSpec(wc.shape, lambda bi: (0, 0, 0)),       # stacked conv weights
            pl.BlockSpec(bc.shape, lambda bi: (0, 0)),          # conv biases (padded)
            pl.BlockSpec(mask.shape, lambda bi: (0, 0)),        # valid-time mask
            pl.BlockSpec(w1.shape, lambda bi: (0, 0)),          # fc1 weight (padded rows)
            pl.BlockSpec(b1.shape, lambda bi: (0, 0)),          # fc1 bias
            pl.BlockSpec(w2.shape, lambda bi: (0, 0)),          # fc2 weight (padded)
            pl.BlockSpec(b2.shape, lambda bi: (0, 0)),          # fc2 bias   (padded)
        ],
        out_specs=pl.BlockSpec((TB, C_PAD), lambda bi: (bi, 0)),
        compiler_params=pltpu.CompilerParams(
            dimension_semantics=("parallel",)),
    )(embeds, wc, bc, mask, w1, b1, w2, b2)
    return out[:N, :C]


def _reference_forward(token_ids, embed_table, params):
    """Pure-JAX f32 reference matching the PyTorch module (eval mode)."""
    conv_ws, conv_bs, fc1w, fc1b, fc2w, fc2b = params
    e = jnp.take(embed_table, token_ids, axis=0)                # (N, L, D)
    N, L, D = e.shape
    feats = []
    for w, b in zip(conv_ws, conv_bs):
        ks = w.shape[-1]
        lo = L - ks + 1
        windows = jnp.stack([e[:, t:t + ks, :] for t in range(lo)], axis=1)  # (N, lo, ks, D)
        c = jnp.einsum('ntsd,kds->ntk', windows, w) + b[None, None, :]
        c = jnp.maximum(c, LRELU_SLOPE * c)
        feats.append(jnp.max(c, axis=1))                        # (N, K)
    x = jnp.concatenate(feats, axis=1)
    h = x @ fc1w.T + fc1b
    h = jnp.maximum(h, LRELU_SLOPE * h)
    return h @ fc2w.T + fc2b


if __name__ == "__main__":
    # Small, module-consistent shapes
    N, L = 2, 8          # batch, sentence length
    V, D = 50, 32        # vocab size, wv_dims
    K = 16               # args.kernels (conv output channels)
    C = 4                # args.n_class
    H = 128              # fc1 hidden size (fixed by the module)

    key = jax.random.PRNGKey(0)
    keys = jax.random.split(key, 16)

    embed_table = 0.1 * jax.random.normal(keys[0], (V, D), jnp.float32)
    embed_table = embed_table.at[0].set(0.0)                 # padding_idx = 0
    token_ids = jax.random.randint(keys[1], (N, L), 0, V, dtype=jnp.int32)

    def uinit(k, shape, fan_in):
        bound = 1.0 / (fan_in ** 0.5)
        return jax.random.uniform(k, shape, jnp.float32, -bound, bound)

    conv_ws, conv_bs = [], []
    for i, ks in enumerate(CONV_KSIZES):
        conv_ws.append(uinit(keys[2 + 2 * i], (K, D, ks), D * ks))   # torch (out, in, k)
        conv_bs.append(uinit(keys[3 + 2 * i], (K,), D * ks))
    fc1w = uinit(keys[10], (H, 4 * K), 4 * K)    # torch (out, in)
    fc1b = uinit(keys[11], (H,), 4 * K)
    fc2w = uinit(keys[12], (C, H), H)
    fc2b = uinit(keys[13], (C,), H)

    params = (tuple(conv_ws), tuple(conv_bs), fc1w, fc1b, fc2w, fc2b)
    packed = prepare_twitter_embedding_params(embed_table, params)

    out = twitter_embedding_forward(token_ids, packed)
    jax.block_until_ready(out)
    assert out.shape == (N, C), out.shape

    # Loose check vs. f32 reference (bf16 inputs/weights -> small deviation expected).
    ref = _reference_forward(token_ids, embed_table, params)
    max_err = float(jnp.max(jnp.abs(out - ref)))
    assert max_err < 3e-2, f"max abs err vs reference: {max_err}"

    print("KERNEL_OK")
</pallas_src>

<mosaic_0001>
module attributes {stable_mosaic.version = 11 : i64} {
  func.func @twitter_embedding_kernel(%arg0: i32, %arg1: memref<8x12x32xbf16, #tpu.memory_space<vmem>>, %arg2: memref<5x32x128xbf16, #tpu.memory_space<vmem>>, %arg3: memref<1x128xf32, #tpu.memory_space<vmem>>, %arg4: memref<8x128xf32, #tpu.memory_space<vmem>>, %arg5: memref<128x128xbf16, #tpu.memory_space<vmem>>, %arg6: memref<1x128xf32, #tpu.memory_space<vmem>>, %arg7: memref<128x128xbf16, #tpu.memory_space<vmem>>, %arg8: memref<1x128xf32, #tpu.memory_space<vmem>>, %arg9: memref<8x128xf32, #tpu.memory_space<vmem>>) attributes {dimension_semantics = [#tpu.dimension_semantics<parallel>], iteration_bounds = array<i64: 1>, scalar_prefetch = 0 : i64, scratch_operands = 0 : i64, tpu.core_type = #tpu.core_type<tc>, window_params = [{transform_indices = @transform_0, window_bounds = array<i64: 8, 12, 32>}, {pipeline_mode = #tpu.pipeline_mode<synchronous>, transform_indices = @transform_1, window_bounds = array<i64: 5, 32, 128>}, {pipeline_mode = #tpu.pipeline_mode<synchronous>, transform_indices = @transform_2, window_bounds = array<i64: 1, 128>}, {pipeline_mode = #tpu.pipeline_mode<synchronous>, transform_indices = @transform_3, window_bounds = array<i64: 8, 128>}, {pipeline_mode = #tpu.pipeline_mode<synchronous>, transform_indices = @transform_4, window_bounds = array<i64: 128, 128>}, {pipeline_mode = #tpu.pipeline_mode<synchronous>, transform_indices = @transform_5, window_bounds = array<i64: 1, 128>}, {pipeline_mode = #tpu.pipeline_mode<synchronous>, transform_indices = @transform_6, window_bounds = array<i64: 128, 128>}, {pipeline_mode = #tpu.pipeline_mode<synchronous>, transform_indices = @transform_7, window_bounds = array<i64: 1, 128>}, {transform_indices = @transform_8, window_bounds = array<i64: 8, 128>}]} {
    %cst = arith.constant 0.000000e+00 : f32
    %0 = vector.broadcast %cst : f32 to vector<64x128xf32>
    %c0 = arith.constant 0 : index
    %c0_0 = arith.constant 0 : index
    %c0_1 = arith.constant 0 : index
    %1 = vector.load %arg1[%c0, %c0_0, %c0_1] : memref<8x12x32xbf16, #tpu.memory_space<vmem>>, vector<8x8x32xbf16>
    %2 = vector.shape_cast %1 : vector<8x8x32xbf16> to vector<64x32xbf16>
    %c0_2 = arith.constant 0 : index
    %c0_3 = arith.constant 0 : index
    %c0_4 = arith.constant 0 : index
    %3 = vector.load %arg2[%c0_2, %c0_3, %c0_4] : memref<5x32x128xbf16, #tpu.memory_space<vmem>>, vector<1x32x128xbf16>
    %4 = vector.shape_cast %3 : vector<1x32x128xbf16> to vector<32x128xbf16>
    %cst_5 = arith.constant dense<0.000000e+00> : vector<64x128xf32>
    %5 = tpu.matmul %2, %4, %cst_5 {dimension_numbers = #tpu.dot_dimension_numbers<[1], [0], [0], [1], [0, 0, 1, 1], [], []>} : vector<64x32xbf16>, vector<32x128xbf16>, vector<64x128xf32> -> vector<64x128xf32>
    %6 = arith.addf %0, %5 : vector<64x128xf32>
    %c0_6 = arith.constant 0 : index
    %c1 = arith.constant 1 : index
    %c0_7 = arith.constant 0 : index
    %7 = vector.load %arg1[%c0_6, %c1, %c0_7] : memref<8x12x32xbf16, #tpu.memory_space<vmem>>, vector<8x8x32xbf16>
    %8 = vector.shape_cast %7 : vector<8x8x32xbf16> to vector<64x32xbf16>
    %c1_8 = arith.constant 1 : index
    %c0_9 = arith.constant 0 : index
    %c0_10 = arith.constant 0 : index
    %9 = vector.load %arg2[%c1_8, %c0_9, %c0_10] : memref<5x32x128xbf16, #tpu.memory_space<vmem>>, vector<1x32x128xbf16>
    %10 = vector.shape_cast %9 : vector<1x32x128xbf16> to vector<32x128xbf16>
    %cst_11 = arith.constant dense<0.000000e+00> : vector<64x128xf32>
    %11 = tpu.matmul %8, %10, %cst_11 {dimension_numbers = #tpu.dot_dimension_numbers<[1], [0], [0], [1], [0, 0, 1, 1], [], []>} : vector<64x32xbf16>, vector<32x128xbf16>, vector<64x128xf32> -> vector<64x128xf32>
    %12 = arith.addf %6, %11 : vector<64x128xf32>
    %c0_12 = arith.constant 0 : index
    %c2 = arith.constant 2 : index
    %c0_13 = arith.constant 0 : index
    %13 = vector.load %arg1[%c0_12, %c2, %c0_13] : memref<8x12x32xbf16, #tpu.memory_space<vmem>>, vector<8x8x32xbf16>
    %14 = vector.shape_cast %13 : vector<8x8x32xbf16> to vector<64x32xbf16>
    %c2_14 = arith.constant 2 : index
    %c0_15 = arith.constant 0 : index
    %c0_16 = arith.constant 0 : index
    %15 = vector.load %arg2[%c2_14, %c0_15, %c0_16] : memref<5x32x128xbf16, #tpu.memory_space<vmem>>, vector<1x32x128xbf16>
    %16 = vector.shape_cast %15 : vector<1x32x128xbf16> to vector<32x128xbf16>
    %cst_17 = arith.constant dense<0.000000e+00> : vector<64x128xf32>
    %17 = tpu.matmul %14, %16, %cst_17 {dimension_numbers = #tpu.dot_dimension_numbers<[1], [0], [0], [1], [0, 0, 1, 1], [], []>} : vector<64x32xbf16>, vector<32x128xbf16>, vector<64x128xf32> -> vector<64x128xf32>
    %18 = arith.addf %12, %17 : vector<64x128xf32>
    %c0_18 = arith.constant 0 : index
    %c3 = arith.constant 3 : index
    %c0_19 = arith.constant 0 : index
    %19 = vector.load %arg1[%c0_18, %c3, %c0_19] : memref<8x12x32xbf16, #tpu.memory_space<vmem>>, vector<8x8x32xbf16>
    %20 = vector.shape_cast %19 : vector<8x8x32xbf16> to vector<64x32xbf16>
    %c3_20 = arith.constant 3 : index
    %c0_21 = arith.constant 0 : index
    %c0_22 = arith.constant 0 : index
    %21 = vector.load %arg2[%c3_20, %c0_21, %c0_22] : memref<5x32x128xbf16, #tpu.memory_space<vmem>>, vector<1x32x128xbf16>
    %22 = vector.shape_cast %21 : vector<1x32x128xbf16> to vector<32x128xbf16>
    %cst_23 = arith.constant dense<0.000000e+00> : vector<64x128xf32>
    %23 = tpu.matmul %20, %22, %cst_23 {dimension_numbers = #tpu.dot_dimension_numbers<[1], [0], [0], [1], [0, 0, 1, 1], [], []>} : vector<64x32xbf16>, vector<32x128xbf16>, vector<64x128xf32> -> vector<64x128xf32>
    %24 = arith.addf %18, %23 : vector<64x128xf32>
    %c0_24 = arith.constant 0 : index
    %c4 = arith.constant 4 : index
    %c0_25 = arith.constant 0 : index
    %25 = vector.load %arg1[%c0_24, %c4, %c0_25] : memref<8x12x32xbf16, #tpu.memory_space<vmem>>, vector<8x8x32xbf16>
    %26 = vector.shape_cast %25 : vector<8x8x32xbf16> to vector<64x32xbf16>
    %c4_26 = arith.constant 4 : index
    %c0_27 = arith.constant 0 : index
    %c0_28 = arith.constant 0 : index
    %27 = vector.load %arg2[%c4_26, %c0_27, %c0_28] : memref<5x32x128xbf16, #tpu.memory_space<vmem>>, vector<1x32x128xbf16>
    %28 = vector.shape_cast %27 : vector<1x32x128xbf16> to vector<32x128xbf16>
    %cst_29 = arith.constant dense<0.000000e+00> : vector<64x128xf32>
    %29 = tpu.matmul %26, %28, %cst_29 {dimension_numbers = #tpu.dot_dimension_numbers<[1], [0], [0], [1], [0, 0, 1, 1], [], []>} : vector<64x32xbf16>, vector<32x128xbf16>, vector<64x128xf32> -> vector<64x128xf32>
    %30 = arith.addf %24, %29 : vector<64x128xf32>
    %31 = vector.shape_cast %30 : vector<64x128xf32> to vector<8x8x128xf32>
    %c0_30 = arith.constant 0 : index
    %c0_31 = arith.constant 0 : index
    %32 = vector.load %arg3[%c0_30, %c0_31] : memref<1x128xf32, #tpu.memory_space<vmem>>, vector<1x128xf32>
    %33 = vector.shape_cast %32 : vector<1x128xf32> to vector<1x1x128xf32>
    %34 = vector.broadcast %33 : vector<1x1x128xf32> to vector<8x8x128xf32>
    %35 = arith.addf %31, %34 : vector<8x8x128xf32>
    %cst_32 = arith.constant 1.000000e-01 : f32
    %36 = vector.broadcast %cst_32 : f32 to vector<8x8x128xf32>
    %37 = arith.mulf %36, %35 : vector<8x8x128xf32>
    %38 = arith.maximumf %35, %37 : vector<8x8x128xf32>
    %c0_33 = arith.constant 0 : index
    %c0_34 = arith.constant 0 : index
    %39 = vector.load %arg4[%c0_33, %c0_34] : memref<8x128xf32, #tpu.memory_space<vmem>>, vector<8x128xf32>
    %40 = vector.shape_cast %39 : vector<8x128xf32> to vector<1x8x128xf32>
    %41 = vector.broadcast %40 : vector<1x8x128xf32> to vector<8x8x128xf32>
    %42 = arith.addf %38, %41 : vector<8x8x128xf32>
    %cst_35 = arith.constant dense<0xFF800000> : vector<8x128xf32>
    %43 = vector.multi_reduction <maximumf>, %42, %cst_35 [1] : vector<8x8x128xf32> to vector<8x128xf32>
    %44 = arith.truncf %43 : vector<8x128xf32> to vector<8x128xbf16>
    %c0_36 = arith.constant 0 : index
    %c0_37 = arith.constant 0 : index
    %45 = vector.load %arg5[%c0_36, %c0_37] : memref<128x128xbf16, #tpu.memory_space<vmem>>, vector<128x128xbf16>
    %cst_38 = arith.constant dense<0.000000e+00> : vector<8x128xf32>
    %46 = tpu.matmul %44, %45, %cst_38 {dimension_numbers = #tpu.dot_dimension_numbers<[1], [0], [0], [1], [0, 0, 1, 1], [], []>} : vector<8x128xbf16>, vector<128x128xbf16>, vector<8x128xf32> -> vector<8x128xf32>
    %c0_39 = arith.constant 0 : index
    %c0_40 = arith.constant 0 : index
    %47 = vector.load %arg6[%c0_39, %c0_40] : memref<1x128xf32, #tpu.memory_space<vmem>>, vector<1x128xf32>
    %48 = vector.broadcast %47 : vector<1x128xf32> to vector<8x128xf32>
    %49 = arith.addf %46, %48 : vector<8x128xf32>
    %cst_41 = arith.constant 1.000000e-01 : f32
    %50 = vector.broadcast %cst_41 : f32 to vector<8x128xf32>
    %51 = arith.mulf %50, %49 : vector<8x128xf32>
    %52 = arith.maximumf %49, %51 : vector<8x128xf32>
    %53 = arith.truncf %52 : vector<8x128xf32> to vector<8x128xbf16>
    %c0_42 = arith.constant 0 : index
    %c0_43 = arith.constant 0 : index
    %54 = vector.load %arg7[%c0_42, %c0_43] : memref<128x128xbf16, #tpu.memory_space<vmem>>, vector<128x128xbf16>
    %cst_44 = arith.constant dense<0.000000e+00> : vector<8x128xf32>
    %55 = tpu.matmul %53, %54, %cst_44 {dimension_numbers = #tpu.dot_dimension_numbers<[1], [0], [0], [1], [0, 0, 1, 1], [], []>} : vector<8x128xbf16>, vector<128x128xbf16>, vector<8x128xf32> -> vector<8x128xf32>
    %c0_45 = arith.constant 0 : index
    %c0_46 = arith.constant 0 : index
    %56 = vector.load %arg8[%c0_45, %c0_46] : memref<1x128xf32, #tpu.memory_space<vmem>>, vector<1x128xf32>
    %57 = vector.broadcast %56 : vector<1x128xf32> to vector<8x128xf32>
    %58 = arith.addf %55, %57 : vector<8x128xf32>
    %c0_47 = arith.constant 0 : index
    %c0_48 = arith.constant 0 : index
    %59 = vector.load %arg9[%c0_47, %c0_48] : memref<8x128xf32, #tpu.memory_space<vmem>>, vector<8x128xf32>
    tpu.vector_store %arg9[%c0_47, %c0_48], %58 {strides = array<i32>} : memref<8x128xf32, #tpu.memory_space<vmem>>, vector<8x128xf32>,
    return
  }
  func.func @transform_0(%arg0: i32) -> (i32, i32, i32) {
    %c0_i32 = arith.constant 0 : i32
    %c0_i32_0 = arith.constant 0 : i32
    %c0_i32_1 = arith.constant 0 : i32
    return %arg0, %c0_i32, %c0_i32_0 : i32, i32, i32
  }
  func.func @transform_1(%arg0: i32) -> (i32, i32, i32) {
    %c0_i32 = arith.constant 0 : i32
    %c0_i32_0 = arith.constant 0 : i32
    %c0_i32_1 = arith.constant 0 : i32
    %c0_i32_2 = arith.constant 0 : i32
    return %c0_i32, %c0_i32_0, %c0_i32_1 : i32, i32, i32
  }
  func.func @transform_2(%arg0: i32) -> (i32, i32) {
    %c0_i32 = arith.constant 0 : i32
    %c0_i32_0 = arith.constant 0 : i32
    %c0_i32_1 = arith.constant 0 : i32
    return %c0_i32, %c0_i32_0 : i32, i32
  }
  func.func @transform_3(%arg0: i32) -> (i32, i32) {
    %c0_i32 = arith.constant 0 : i32
    %c0_i32_0 = arith.constant 0 : i32
    %c0_i32_1 = arith.constant 0 : i32
    return %c0_i32, %c0_i32_0 : i32, i32
  }
  func.func @transform_4(%arg0: i32) -> (i32, i32) {
    %c0_i32 = arith.constant 0 : i32
    %c0_i32_0 = arith.constant 0 : i32
    %c0_i32_1 = arith.constant 0 : i32
    return %c0_i32, %c0_i32_0 : i32, i32
  }
  func.func @transform_5(%arg0: i32) -> (i32, i32) {
    %c0_i32 = arith.constant 0 : i32
    %c0_i32_0 = arith.constant 0 : i32
    %c0_i32_1 = arith.constant 0 : i32
    return %c0_i32, %c0_i32_0 : i32, i32
  }
  func.func @transform_6(%arg0: i32) -> (i32, i32) {
    %c0_i32 = arith.constant 0 : i32
    %c0_i32_0 = arith.constant 0 : i32
    %c0_i32_1 = arith.constant 0 : i32
    return %c0_i32, %c0_i32_0 : i32, i32
  }
  func.func @transform_7(%arg0: i32) -> (i32, i32) {
    %c0_i32 = arith.constant 0 : i32
    %c0_i32_0 = arith.constant 0 : i32
    %c0_i32_1 = arith.constant 0 : i32
    return %c0_i32, %c0_i32_0 : i32, i32
  }
  func.func @transform_8(%arg0: i32) -> (i32, i32) {
    %c0_i32 = arith.constant 0 : i32
    %c0_i32_0 = arith.constant 0 : i32
    return %arg0, %c0_i32 : i32, i32
  }
}

</mosaic_0001>

<llo_original>
// kernel: tpu_custom_call.1
$region0: #{tpu_custom_call.1}
  #allocation0 [shape = 'u32[]', space=smem, size = 0x4, offset = 0x4, fixed_abs, tag = 'smem constant byte address 0x4 - core index']
  #allocation1 [shape = 'u32[144,128]{1,0:T(1,128)}', space=vmem, size = 0x12000, scoped, tag = 'internal scratch']
  %s0 = inlined_call_operand.vmem [shape: bf16[8,12,32], index: 0, kind: input, shape index: {}]
  %s1 = inlined_call_operand.vmem [shape: bf16[5,32,128], index: 1, kind: input, shape index: {}]
  %s2 = inlined_call_operand.vmem [shape: f32[1,128], index: 2, kind: input, shape index: {}]
  %s3 = inlined_call_operand.vmem [shape: f32[8,128], index: 3, kind: input, shape index: {}]
  %s4 = inlined_call_operand.hbm [shape: bf16[128,128], index: 4, kind: input, shape index: {}]
  %s5 = inlined_call_operand.vmem [shape: f32[1,128], index: 5, kind: input, shape index: {}]
  %s6 = inlined_call_operand.hbm [shape: bf16[128,128], index: 6, kind: input, shape index: {}]
  %s7 = inlined_call_operand.vmem [shape: f32[1,128], index: 7, kind: input, shape index: {}]
  %s8 = inlined_call_operand.hbm [shape: f32[8,128], index: 8, kind: output, shape index: {}]
  %s9 = sld [smem:[#allocation0]]
  $region50: #{tpu_custom_call.1} parent=0
    _
  %s11 = ssub.s32 1, %s9
  %s12 = scalar_select 0, %s11, %s9
  $region1: #{tpu_custom_call.1} parent=0
    #allocation2 [shape = 'u8[32768]{0}', space=vmem, size = 0x8000, scoped, tag = 'input window, operand 4, single buffered']
    #allocation3 [shape = 's32[1]{0}', space=sflag, size = 0x4, scoped, tag = 'scoped memory for tpu_custom_call.1']
    #allocation4 [shape = 's32[1]{0}', space=sflag, size = 0x4, scoped, tag = 'scoped memory for tpu_custom_call.1']
    #allocation5 [shape = 'u8[32768]{0}', space=vmem, size = 0x8000, scoped, tag = 'input window, operand 6, single buffered']
    #allocation6 [shape = 's32[1]{0}', space=sflag, size = 0x4, scoped, tag = 'scoped memory for tpu_custom_call.1']
    #allocation7 [shape = 'u8[4096]{0}', space=vmem, size = 0x1000, scoped, tag = 'output window, operand 0, single buffered']
    %13 = vsyncpa [#allocation3], 0
    %14 = vsyncpa [#allocation6], 0
    %15 = vsyncpa [#allocation4], 0
    // Predicated region
    $region2: #{tpu_custom_call.1} parent=1 // pred_check
      _
    $region3: #{tpu_custom_call.1} parent=1 // pred_check_branch
      %17 = sbr.rel (0) target = $region5
    $region4: #{tpu_custom_call.1} parent=1 // pred_region
      _
    $region5: #{tpu_custom_call.1} parent=1 // pred_fallthru
      _
    // Predicated region
    $region6: #{tpu_custom_call.1} parent=1 // pred_check
      _
    $region7: #{tpu_custom_call.1} parent=1 // pred_check_branch
      %19 = sbr.rel (0) target = $region9
    $region8: #{tpu_custom_call.1} parent=1 // pred_region
      _
    $region9: #{tpu_custom_call.1} parent=1 // pred_fallthru
      _
    // Predicated region
    $region10: #{tpu_custom_call.1} parent=1 // pred_check
      _
    $region11: #{tpu_custom_call.1} parent=1 // pred_check_branch
      %21 = sbr.rel (0) target = $region13
    $region12: #{tpu_custom_call.1} parent=1 // pred_region
      _
    $region13: #{tpu_custom_call.1} parent=1 // pred_fallthru
      _
    // Predicated region
    $region14: #{tpu_custom_call.1} parent=1 // pred_check
      _
    $region15: #{tpu_custom_call.1} parent=1 // pred_check_branch
      %23 = sbr.rel (0) target = $region17
    $region16: #{tpu_custom_call.1} parent=1 // pred_region
      _
    $region17: #{tpu_custom_call.1} parent=1 // pred_fallthru
      _
    // Predicated region
    $region18: #{tpu_custom_call.1} parent=1 // pred_check
      _
    $region19: #{tpu_custom_call.1} parent=1 // pred_check_branch
      %25 = sbr.rel (0) target = $region21
    $region20: #{tpu_custom_call.1} parent=1 // pred_region
      %s27 = ssub.s32 1024, 1024
      %28 = vsyncadd [#allocation3], %s27
      %s29 = sshll.u32 [#allocation2], 4
      %s30 = int_to_ptr.vmem [resolvable:$true] %s29
      %35 = dma.hbm_to_vmem [thread:$0]  %s4, 1024, %s30, [#allocation3], 64, 64, 4
    $region21: #{tpu_custom_call.1} parent=1 // pred_fallthru
      _
    // Predicated region
    $region22: #{tpu_custom_call.1} parent=1 // pred_check
      _
    $region23: #{tpu_custom_call.1} parent=1 // pred_check_branch
      %37 = sbr.rel (0) target = $region25
    $region24: #{tpu_custom_call.1} parent=1 // pred_region
      _
    $region25: #{tpu_custom_call.1} parent=1 // pred_fallthru
      _
    // Predicated region
    $region26: #{tpu_custom_call.1} parent=1 // pred_check
      _
    $region27: #{tpu_custom_call.1} parent=1 // pred_check_branch
      %39 = sbr.rel (0) target = $region29
    $region28: #{tpu_custom_call.1} parent=1 // pred_region
      %s41 = ssub.s32 1024, 1024
      %42 = vsyncadd [#allocation6], %s41
      %s43 = sshll.u32 [#allocation5], 4
      %s44 = int_to_ptr.vmem [resolvable:$true] %s43
      %49 = dma.hbm_to_vmem [thread:$0]  %s6, 1024, %s44, [#allocation6], 64, 64, 4
    $region29: #{tpu_custom_call.1} parent=1 // pred_fallthru
      _
    // Predicated region
    $region30: #{tpu_custom_call.1} parent=1 // pred_check
      _
    $region31: #{tpu_custom_call.1} parent=1 // pred_check_branch
      %51 = sbr.rel (0) target = $region33
    $region32: #{tpu_custom_call.1} parent=1 // pred_region
      _
    $region33: #{tpu_custom_call.1} parent=1 // pred_fallthru
      _
    // Predicated region
    $region34: #{tpu_custom_call.1} parent=1 // pred_check
      _
    $region35: #{tpu_custom_call.1} parent=1 // pred_check_branch
      %53 = sbr.rel (0) target = $region37
    $region36: #{tpu_custom_call.1} parent=1 // pred_region
      %54 = dma.done [#allocation3], 1024
    $region37: #{tpu_custom_call.1} parent=1 // pred_fallthru
      _
    // Predicated region
    $region38: #{tpu_custom_call.1} parent=1 // pred_check
      _
    $region39: #{tpu_custom_call.1} parent=1 // pred_check_branch
      %56 = sbr.rel (0) target = $region41
    $region40: #{tpu_custom_call.1} parent=1 // pred_region
      %57 = dma.done [#allocation6], 1024
    $region41: #{tpu_custom_call.1} parent=1 // pred_fallthru
      _
    %v59 = vld [vmem:[%s0] sm:$0xf]
    %v60 = vld [vmem:[%s0 + $0x8] sm:$0xf]
    %v61 = vld [vmem:[%s0 + $0x10] sm:$0xf]
    %v62 = vld [vmem:[%s0 + $0x18] sm:$0xf]
    %v63 = vld [vmem:[%s0 + $0x20] sm:$0xf]
    %v64 = vld [vmem:[%s0 + $0x28] sm:$0xf]
    %v65 = vld [vmem:[%s0 + $0x30] sm:$0xf]
    %v66 = vld [vmem:[%s0 + $0x38] sm:$0xf]
    %v67 = vld [vmem:[%s1] sm:$0xf]
    %v68 = vld [vmem:[%s1 + $0x4] sm:$0xf]
    %v69 = vld [vmem:[%s1 + $0x8] sm:$0xf]
    %v70 = vld [vmem:[%s1 + $0xc] sm:$0xf]
    %v71 = vld [vmem:[%s0 + $0x4] sm:$0x1]
    %v72 = vld [vmem:[%s0 + $0xc] sm:$0x1]
    %v73 = vld [vmem:[%s0 + $0x14] sm:$0x1]
    %v74 = vld [vmem:[%s0 + $0x1c] sm:$0x1]
    %v75 = vld [vmem:[%s0 + $0x24] sm:$0x1]
    %v76 = vld [vmem:[%s0 + $0x2c] sm:$0x1]
    %v77 = vld [vmem:[%s0 + $0x34] sm:$0x1]
    %v78 = vld [vmem:[%s0 + $0x3c] sm:$0x1]
    %vm79 = vsmask.f32 3328
    %vm80 = vsmask.f32 7440
    %vm81 = vmor %vm79, %vm80
    %v83 = vshrl.u32 %v59, 16
    %v85 = vrot.slane %v83, 4
    %v86 = vshll.u32 %v59, 16
    %v88 = vrot.slane %v86, 5
    %v89 = vor.u32 %v85, %v88
    %v90 = vrot.slane %v89, 4
    %v92 = vshll.u32 %v71, 16
    %v94 = vrot.slane %v92, 5
    %v95 = vsel %vm81, %v90, %v94
    %v97 = vshrl.u32 %v60, 16
    %v99 = vrot.slane %v97, 4
    %v100 = vshll.u32 %v60, 16
    %v102 = vrot.slane %v100, 5
    %v103 = vor.u32 %v99, %v102
    %v104 = vrot.slane %v103, 4
    %v106 = vshll.u32 %v72, 16
    %v108 = vrot.slane %v106, 5
    %v109 = vsel %vm81, %v104, %v108
    %v111 = vshrl.u32 %v61, 16
    %v113 = vrot.slane %v111, 4
    %v114 = vshll.u32 %v61, 16
    %v116 = vrot.slane %v114, 5
    %v117 = vor.u32 %v113, %v116
    %v118 = vrot.slane %v117, 4
    %v120 = vshll.u32 %v73, 16
    %v122 = vrot.slane %v120, 5
    %v123 = vsel %vm81, %v118, %v122
    %v125 = vshrl.u32 %v62, 16
    %v127 = vrot.slane %v125, 4
    %v128 = vshll.u32 %v62, 16
    %v130 = vrot.slane %v128, 5
    %v131 = vor.u32 %v127, %v130
    %v132 = vrot.slane %v131, 4
    %v134 = vshll.u32 %v74, 16
    %v136 = vrot.slane %v134, 5
    %v137 = vsel %vm81, %v132, %v136
    %v139 = vshrl.u32 %v63, 16
    %v141 = vrot.slane %v139, 4
    %v142 = vshll.u32 %v63, 16
    %v144 = vrot.slane %v142, 5
    %v145 = vor.u32 %v141, %v144
    %v146 = vrot.slane %v145, 4
    %v148 = vshll.u32 %v75, 16
    %v150 = vrot.slane %v148, 5
    %v151 = vsel %vm81, %v146, %v150
    %v153 = vshrl.u32 %v64, 16
    %v155 = vrot.slane %v153, 4
    %v156 = vshll.u32 %v64, 16
    %v158 = vrot.slane %v156, 5
    %v159 = vor.u32 %v155, %v158
    %v160 = vrot.slane %v159, 4
    %v162 = vshll.u32 %v76, 16
    %v164 = vrot.slane %v162, 5
    %v165 = vsel %vm81, %v160, %v164
    %v167 = vshrl.u32 %v65, 16
    %v169 = vrot.slane %v167, 4
    %v170 = vshll.u32 %v65, 16
    %v172 = vrot.slane %v170, 5
    %v173 = vor.u32 %v169, %v172
    %v174 = vrot.slane %v173, 4
    %v176 = vshll.u32 %v77, 16
    %v178 = vrot.slane %v176, 5
    %v179 = vsel %vm81, %v174, %v178
    %v181 = vshrl.u32 %v66, 16
    %v183 = vrot.slane %v181, 4
    %v184 = vshll.u32 %v66, 16
    %v186 = vrot.slane %v184, 5
    %v187 = vor.u32 %v183, %v186
    %v188 = vrot.slane %v187, 4
    %v190 = vshll.u32 %v78, 16
    %v192 = vrot.slane %v190, 5
    %v193 = vsel %vm81, %v188, %v192
    %s194 = scalar_lea.vmem %s1, 16
    %v195 = vld [vmem:[%s194] sm:$0xf]
    %v196 = vld [vmem:[%s194 + $0x4] sm:$0xf]
    %v197 = vld [vmem:[%s194 + $0x8] sm:$0xf]
    %v198 = vld [vmem:[%s194 + $0xc] sm:$0xf]
    %v199 = vunpack.c.l.b16 %v95
    %v200 = vunpack.c.l.b16 %v109
    %v201 = vunpack.c.l.b16 %v123
    %v202 = vunpack.c.l.b16 %v137
    %v203 = vunpack.c.l.b16 %v151
    %v204 = vunpack.c.l.b16 %v165
    %v205 = vunpack.c.l.b16 %v179
    %v206 = vunpack.c.l.b16 %v193
    %v207 = vpack.c.b16 %v200, %v199
    %v208 = vpack.c.b16 %v202, %v201
    %v209 = vpack.c.b16 %v204, %v203
    %v210 = vpack.c.b16 %v206, %v205
    %v215 = vunpack.c.l.b16 %v195
    %v216 = vunpack.c.l.b16 %v196
    %v217 = vunpack.c.l.b16 %v197
    %v218 = vunpack.c.l.b16 %v198
    %v219 = vpack.c.b16 %v216, %v215
    %v220 = vpack.c.b16 %v218, %v217
    %vm223 = vcmask 261120
    %v225 = vsel %vm223, %v207, 0
    %v228 = vsel %vm223, %v208, 0
    %v231 = vsel %vm223, %v209, 0
    %v234 = vsel %vm223, %v210, 0
    %236 = vmatprep.subr.bf16.mxu0 0
    %237 = vmatpush1.bf16.msra.mxu0 %v219
    %238 = vmatprep.subr.bf16.mxu0 0
    %239 = vmatpush1.bf16.msra.mxu0 %v220
    %240 = vmatprep.subr.bf16.mxu0 0
    %241 = vmatpush1.bf16.msra.mxu0 0
    %242 = vmatprep.subr.bf16.mxu0 0
    %243 = vmatpush1.bf16.msra.mxu0 0
    %244 = vmatprep.subr.bf16.mxu0 0
    %245 = vmatpush1.bf16.msra.mxu0 0
    %246 = vmatprep.subr.bf16.mxu0 0
    %247 = vmatpush1.bf16.msra.mxu0 0
    %248 = vmatprep.subr.bf16.mxu0 0
    %249 = vmatpush1.bf16.msra.mxu0 0
    %250 = vmatprep.subr.bf16.mxu0 0
    %251 = vmatpush1.bf16.msra.mxu0 0
    %252 = vmatprep.subr.bf16.mxu0 0
    %253 = vmatpush1.bf16.msra.mxu0 0
    %254 = vmatprep.subr.bf16.mxu0 0
    %255 = vmatpush1.bf16.msra.mxu0 0
    %256 = vmatprep.subr.bf16.mxu0 0
    %257 = vmatpush1.bf16.msra.mxu0 0
    %258 = vmatprep.subr.bf16.mxu0 0
    %259 = vmatpush1.bf16.msra.mxu0 0
    %260 = vmatprep.subr.bf16.mxu0 0
    %261 = vmatpush1.bf16.msra.mxu0 0
    %262 = vmatprep.subr.bf16.mxu0 0
    %263 = vmatpush1.bf16.msra.mxu0 0
    %264 = vmatprep.subr.bf16.mxu0 0
    %265 = vmatpush1.bf16.msra.mxu0 0
    %266 = vmatprep.subr.bf16.mxu0 0
    %267 = vmatpush1.bf16.msra.mxu0 0
    %268 = vmatprep.mubr.bf16.mxu0 0
    %269 = vmatmul.mubr.bf16.gmra.mrb[0].mxu0 %v225
    %v270 = vpop.f32.mrb[0].mxu0
    %v271 = vadd.f32 0.0, %v270
    %v272 = vpop.f32.mrb[0].mxu0
    %v273 = vpop.f32.mrb[0].mxu0
    %v274 = vadd.f32 0.0, %v273
    %v275 = vpop.f32.mrb[0].mxu0
    %276 = vmatprep.mubr.bf16.mxu0 0
    %277 = vmatmul.mubr.bf16.gmra.mrb[0].mxu0 %v228
    %v278 = vpop.f32.mrb[0].mxu0
    %v279 = vadd.f32 0.0, %v278
    %v280 = vpop.f32.mrb[0].mxu0
    %v281 = vpop.f32.mrb[0].mxu0
    %v282 = vadd.f32 0.0, %v281
    %v283 = vpop.f32.mrb[0].mxu0
    %284 = vmatprep.mubr.bf16.mxu0 0
    %285 = vmatmul.mubr.bf16.gmra.mrb[0].mxu0 %v231
    %v286 = vpop.f32.mrb[0].mxu0
    %v287 = vadd.f32 0.0, %v286
    %v288 = vpop.f32.mrb[0].mxu0
    %v289 = vpop.f32.mrb[0].mxu0
    %v290 = vadd.f32 0.0, %v289
    %v291 = vpop.f32.mrb[0].mxu0
    %292 = vmatprep.mubr.bf16.mxu0 0
    %293 = vmatmul.mubr.bf16.gmra.mrb[0].mxu0 %v234
    %v294 = vpop.f32.mrb[0].mxu0
    %v295 = vadd.f32 0.0, %v294
    %v296 = vpop.f32.mrb[0].mxu0
    %v297 = vpop.f32.mrb[0].mxu0
    %v298 = vadd.f32 0.0, %v297
    %v299 = vpop.f32.mrb[0].mxu0
    %300 = vdwg.mxu0
    %v309 = vunpack.c.l.b16 %v59
    %v310 = vunpack.c.l.b16 %v60
    %v311 = vunpack.c.l.b16 %v61
    %v312 = vunpack.c.l.b16 %v62
    %v313 = vunpack.c.l.b16 %v63
    %v314 = vunpack.c.l.b16 %v64
    %v315 = vunpack.c.l.b16 %v65
    %v316 = vunpack.c.l.b16 %v66
    %v317 = vpack.c.b16 %v310, %v309
    %v318 = vpack.c.b16 %v312, %v311
    %v319 = vpack.c.b16 %v314, %v313
    %v320 = vpack.c.b16 %v316, %v315
    %v325 = vunpack.c.l.b16 %v67
    %v326 = vunpack.c.l.b16 %v68
    %v327 = vunpack.c.l.b16 %v69
    %v328 = vunpack.c.l.b16 %v70
    %v329 = vpack.c.b16 %v326, %v325
    %v330 = vpack.c.b16 %v328, %v327
    %v334 = vsel %vm223, %v317, 0
    %v337 = vsel %vm223, %v318, 0
    %v340 = vsel %vm223, %v319, 0
    %v343 = vsel %vm223, %v320, 0
    %345 = vmatprep.subr.bf16.mxu0 0
    %346 = vmatpush1.bf16.msra.mxu0 %v329
    %347 = vmatprep.subr.bf16.mxu0 0
    %348 = vmatpush1.bf16.msra.mxu0 %v330
    %349 = vmatprep.subr.bf16.mxu0 0
    %350 = vmatpush1.bf16.msra.mxu0 0
    %351 = vmatprep.subr.bf16.mxu0 0
    %352 = vmatpush1.bf16.msra.mxu0 0
    %353 = vmatprep.subr.bf16.mxu0 0
    %354 = vmatpush1.bf16.msra.mxu0 0
    %355 = vmatprep.subr.bf16.mxu0 0
    %356 = vmatpush1.bf16.msra.mxu0 0
    %357 = vmatprep.subr.bf16.mxu0 0
    %358 = vmatpush1.bf16.msra.mxu0 0
    %359 = vmatprep.subr.bf16.mxu0 0
    %360 = vmatpush1.bf16.msra.mxu0 0
    %361 = vmatprep.subr.bf16.mxu0 0
    %362 = vmatpush1.bf16.msra.mxu0 0
    %363 = vmatprep.subr.bf16.mxu0 0
    %364 = vmatpush1.bf16.msra.mxu0 0
    %365 = vmatprep.subr.bf16.mxu0 0
    %366 = vmatpush1.bf16.msra.mxu0 0
    %367 = vmatprep.subr.bf16.mxu0 0
    %368 = vmatpush1.bf16.msra.mxu0 0
    %369 = vmatprep.subr.bf16.mxu0 0
    %370 = vmatpush1.bf16.msra.mxu0 0
    %371 = vmatprep.subr.bf16.mxu0 0
    %372 = vmatpush1.bf16.msra.mxu0 0
    %373 = vmatprep.subr.bf16.mxu0 0
    %374 = vmatpush1.bf16.msra.mxu0 0
    %375 = vmatprep.subr.bf16.mxu0 0
    %376 = vmatpush1.bf16.msra.mxu0 0
    %377 = vmatprep.mubr.bf16.mxu0 0
    %378 = vmatmul.mubr.bf16.gmra.mrb[0].mxu0 %v334
    %v379 = vpop.f32.mrb[0].mxu0
    %v380 = vadd.f32 %v271, %v379
    %v381 = vpop.f32.mrb[0].mxu0
    %v382 = vpop.f32.mrb[0].mxu0
    %v383 = vadd.f32 %v274, %v382
    %v384 = vpop.f32.mrb[0].mxu0
    %385 = vmatprep.mubr.bf16.mxu0 0
    %386 = vmatmul.mubr.bf16.gmra.mrb[0].mxu0 %v337
    %v387 = vpop.f32.mrb[0].mxu0
    %v388 = vadd.f32 %v279, %v387
    %v389 = vpop.f32.mrb[0].mxu0
    %v390 = vpop.f32.mrb[0].mxu0
    %v391 = vadd.f32 %v282, %v390
    %v392 = vpop.f32.mrb[0].mxu0
    %393 = vmatprep.mubr.bf16.mxu0 0
    %394 = vmatmul.mubr.bf16.gmra.mrb[0].mxu0 %v340
    %v395 = vpop.f32.mrb[0].mxu0
    %v396 = vadd.f32 %v287, %v395
    %v397 = vpop.f32.mrb[0].mxu0
    %v398 = vpop.f32.mrb[0].mxu0
    %v399 = vadd.f32 %v290, %v398
    %v400 = vpop.f32.mrb[0].mxu0
    %401 = vmatprep.mubr.bf16.mxu0 0
    %402 = vmatmul.mubr.bf16.gmra.mrb[0].mxu0 %v343
    %v403 = vpop.f32.mrb[0].mxu0
    %v404 = vadd.f32 %v295, %v403
    %v405 = vpop.f32.mrb[0].mxu0
    %v406 = vpop.f32.mrb[0].mxu0
    %v407 = vadd.f32 %v298, %v406
    %v408 = vpop.f32.mrb[0].mxu0
    %409 = vdwg.mxu0
    %v410 = vld [vmem:[%s0] sm:$0xe]
    %v411 = vld [vmem:[%s0 + $0x8] sm:$0xe]
    %v412 = vld [vmem:[%s0 + $0x10] sm:$0xe]
    %v413 = vld [vmem:[%s0 + $0x18] sm:$0xe]
    %v414 = vld [vmem:[%s0 + $0x20] sm:$0xe]
    %v415 = vld [vmem:[%s0 + $0x28] sm:$0xe]
    %v416 = vld [vmem:[%s0 + $0x30] sm:$0xe]
    %v417 = vld [vmem:[%s0 + $0x38] sm:$0xe]
    %vm434 = vcmask 1042432
    %vm435 = vcmask 1046532
    %vm436 = vmor %vm434, %vm435
    %v437 = vrot.slane %v410, 5
    %v438 = vrot.slane %v437, 4
    %v439 = vrot.slane %v71, 5
    %v440 = vsel %vm436, %v438, %v439
    %v441 = vrot.slane %v411, 5
    %v442 = vrot.slane %v441, 4
    %v443 = vrot.slane %v72, 5
    %v444 = vsel %vm436, %v442, %v443
    %v445 = vrot.slane %v412, 5
    %v446 = vrot.slane %v445, 4
    %v447 = vrot.slane %v73, 5
    %v448 = vsel %vm436, %v446, %v447
    %v449 = vrot.slane %v413, 5
    %v450 = vrot.slane %v449, 4
    %v451 = vrot.slane %v74, 5
    %v452 = vsel %vm436, %v450, %v451
    %v453 = vrot.slane %v414, 5
    %v454 = vrot.slane %v453, 4
    %v455 = vrot.slane %v75, 5
    %v456 = vsel %vm436, %v454, %v455
    %v457 = vrot.slane %v415, 5
    %v458 = vrot.slane %v457, 4
    %v459 = vrot.slane %v76, 5
    %v460 = vsel %vm436, %v458, %v459
    %v461 = vrot.slane %v416, 5
    %v462 = vrot.slane %v461, 4
    %v463 = vrot.slane %v77, 5
    %v464 = vsel %vm436, %v462, %v463
    %v465 = vrot.slane %v417, 5
    %v466 = vrot.slane %v465, 4
    %v467 = vrot.slane %v78, 5
    %v468 = vsel %vm436, %v466, %v467
    %s469 = scalar_lea.vmem %s1, 32
    %v470 = vld [vmem:[%s469] sm:$0xf]
    %v471 = vld [vmem:[%s469 + $0x4] sm:$0xf]
    %v472 = vld [vmem:[%s469 + $0x8] sm:$0xf]
    %v473 = vld [vmem:[%s469 + $0xc] sm:$0xf]
    %v474 = vunpack.c.l.b16 %v440
    %v475 = vunpack.c.l.b16 %v444
    %v476 = vunpack.c.l.b16 %v448
    %v477 = vunpack.c.l.b16 %v452
    %v478 = vunpack.c.l.b16 %v456
    %v479 = vunpack.c.l.b16 %v460
    %v480 = vunpack.c.l.b16 %v464
    %v481 = vunpack.c.l.b16 %v468
    %v482 = vpack.c.b16 %v475, %v474
    %v483 = vpack.c.b16 %v477, %v476
    %v484 = vpack.c.b16 %v479, %v478
    %v485 = vpack.c.b16 %v481, %v480
    %v490 = vunpack.c.l.b16 %v470
    %v491 = vunpack.c.l.b16 %v471
    %v492 = vunpack.c.l.b16 %v472
    %v493 = vunpack.c.l.b16 %v473
    %v494 = vpack.c.b16 %v491, %v490
    %v495 = vpack.c.b16 %v493, %v492
    %v499 = vsel %vm223, %v482, 0
    %v502 = vsel %vm223, %v483, 0
    %v505 = vsel %vm223, %v484, 0
    %v508 = vsel %vm223, %v485, 0
    %510 = vmatprep.subr.bf16.mxu0 0
    %511 = vmatpush1.bf16.msra.mxu0 %v494
    %512 = vmatprep.subr.bf16.mxu0 0
    %513 = vmatpush1.bf16.msra.mxu0 %v495
    %514 = vmatprep.subr.bf16.mxu0 0
    %515 = vmatpush1.bf16.msra.mxu0 0
    %516 = vmatprep.subr.bf16.mxu0 0
    %517 = vmatpush1.bf16.msra.mxu0 0
    %518 = vmatprep.subr.bf16.mxu0 0
    %519 = vmatpush1.bf16.msra.mxu0 0
    %520 = vmatprep.subr.bf16.mxu0 0
    %521 = vmatpush1.bf16.msra.mxu0 0
    %522 = vmatprep.subr.bf16.mxu0 0
    %523 = vmatpush1.bf16.msra.mxu0 0
    %524 = vmatprep.subr.bf16.mxu0 0
    %525 = vmatpush1.bf16.msra.mxu0 0
    %526 = vmatprep.subr.bf16.mxu0 0
    %527 = vmatpush1.bf16.msra.mxu0 0
    %528 = vmatprep.subr.bf16.mxu0 0
    %529 = vmatpush1.bf16.msra.mxu0 0
    %530 = vmatprep.subr.bf16.mxu0 0
    %531 = vmatpush1.bf16.msra.mxu0 0
    %532 = vmatprep.subr.bf16.mxu0 0
    %533 = vmatpush1.bf16.msra.mxu0 0
    %534 = vmatprep.subr.bf16.mxu0 0
    %535 = vmatpush1.bf16.msra.mxu0 0
    %536 = vmatprep.subr.bf16.mxu0 0
    %537 = vmatpush1.bf16.msra.mxu0 0
    %538 = vmatprep.subr.bf16.mxu0 0
    %539 = vmatpush1.bf16.msra.mxu0 0
    %540 = vmatprep.subr.bf16.mxu0 0
    %541 = vmatpush1.bf16.msra.mxu0 0
    %542 = vmatprep.mubr.bf16.mxu0 0
    %543 = vmatmul.mubr.bf16.gmra.mrb[0].mxu0 %v499
    %v544 = vpop.f32.mrb[0].mxu0
    %v545 = vadd.f32 0.0, %v544
    %v546 = vpop.f32.mrb[0].mxu0
    %v547 = vpop.f32.mrb[0].mxu0
    %v548 = vadd.f32 0.0, %v547
    %v549 = vpop.f32.mrb[0].mxu0
    %550 = vmatprep.mubr.bf16.mxu0 0
    %551 = vmatmul.mubr.bf16.gmra.mrb[0].mxu0 %v502
    %v552 = vpop.f32.mrb[0].mxu0
    %v553 = vadd.f32 0.0, %v552
    %v554 = vpop.f32.mrb[0].mxu0
    %v555 = vpop.f32.mrb[0].mxu0
    %v556 = vadd.f32 0.0, %v555
    %v557 = vpop.f32.mrb[0].mxu0
    %558 = vmatprep.mubr.bf16.mxu0 0
    %559 = vmatmul.mubr.bf16.gmra.mrb[0].mxu0 %v505
    %v560 = vpop.f32.mrb[0].mxu0
    %v561 = vadd.f32 0.0, %v560
    %v562 = vpop.f32.mrb[0].mxu0
    %v563 = vpop.f32.mrb[0].mxu0
    %v564 = vadd.f32 0.0, %v563
    %v565 = vpop.f32.mrb[0].mxu0
    %566 = vmatprep.mubr.bf16.mxu0 0
    %567 = vmatmul.mubr.bf16.gmra.mrb[0].mxu0 %v508
    %v568 = vpop.f32.mrb[0].mxu0
    %v569 = vadd.f32 0.0, %v568
    %v570 = vpop.f32.mrb[0].mxu0
    %v571 = vpop.f32.mrb[0].mxu0
    %v572 = vadd.f32 0.0, %v571
    %v573 = vpop.f32.mrb[0].mxu0
    %574 = vdwg.mxu0
    %v575 = vadd.f32 %v380, %v545
    %v576 = vadd.f32 %v383, %v548
    %v577 = vadd.f32 %v388, %v553
    %v578 = vadd.f32 %v391, %v556
    %v579 = vadd.f32 %v396, %v561
    %v580 = vadd.f32 %v399, %v564
    %v581 = vadd.f32 %v404, %v569
    %v582 = vadd.f32 %v407, %v572
    %v583 = vld [vmem:[%s0 + $0x4] sm:$0x3]
    %v584 = vld [vmem:[%s0 + $0xc] sm:$0x3]
    %v585 = vld [vmem:[%s0 + $0x14] sm:$0x3]
    %v586 = vld [vmem:[%s0 + $0x1c] sm:$0x3]
    %v587 = vld [vmem:[%s0 + $0x24] sm:$0x3]
    %v588 = vld [vmem:[%s0 + $0x2c] sm:$0x3]
    %v589 = vld [vmem:[%s0 + $0x34] sm:$0x3]
    %v590 = vld [vmem:[%s0 + $0x3c] sm:$0x3]
    %vm591 = vsmask.f32 2304
    %vm592 = vsmask.f32 6416
    %vm593 = vmor %vm591, %vm592
    %v595 = vshrl.u32 %v410, 16
    %v597 = vrot.slane %v595, 5
    %v598 = vshll.u32 %v410, 16
    %v600 = vrot.slane %v598, 6
    %v601 = vor.u32 %v597, %v600
    %v602 = vrot.slane %v601, 4
    %v604 = vshrl.u32 %v583, 16
    %v606 = vrot.slane %v604, 5
    %v607 = vshll.u32 %v583, 16
    %v609 = vrot.slane %v607, 6
    %v610 = vor.u32 %v606, %v609
    %v611 = vsel %vm593, %v602, %v610
    %v613 = vshrl.u32 %v411, 16
    %v615 = vrot.slane %v613, 5
    %v616 = vshll.u32 %v411, 16
    %v618 = vrot.slane %v616, 6
    %v619 = vor.u32 %v615, %v618
    %v620 = vrot.slane %v619, 4
    %v622 = vshrl.u32 %v584, 16
    %v624 = vrot.slane %v622, 5
    %v625 = vshll.u32 %v584, 16
    %v627 = vrot.slane %v625, 6
    %v628 = vor.u32 %v624, %v627
    %v629 = vsel %vm593, %v620, %v628
    %v631 = vshrl.u32 %v412, 16
    %v633 = vrot.slane %v631, 5
    %v634 = vshll.u32 %v412, 16
    %v636 = vrot.slane %v634, 6
    %v637 = vor.u32 %v633, %v636
    %v638 = vrot.slane %v637, 4
    %v640 = vshrl.u32 %v585, 16
    %v642 = vrot.slane %v640, 5
    %v643 = vshll.u32 %v585, 16
    %v645 = vrot.slane %v643, 6
    %v646 = vor.u32 %v642, %v645
    %v647 = vsel %vm593, %v638, %v646
    %v649 = vshrl.u32 %v413, 16
    %v651 = vrot.slane %v649, 5
    %v652 = vshll.u32 %v413, 16
    %v654 = vrot.slane %v652, 6
    %v655 = vor.u32 %v651, %v654
    %v656 = vrot.slane %v655, 4
    %v658 = vshrl.u32 %v586, 16
    %v660 = vrot.slane %v658, 5
    %v661 = vshll.u32 %v586, 16
    %v663 = vrot.slane %v661, 6
    %v664 = vor.u32 %v660, %v663
    %v665 = vsel %vm593, %v656, %v664
    %v667 = vshrl.u32 %v414, 16
    %v669 = vrot.slane %v667, 5
    %v670 = vshll.u32 %v414, 16
    %v672 = vrot.slane %v670, 6
    %v673 = vor.u32 %v669, %v672
    %v674 = vrot.slane %v673, 4
    %v676 = vshrl.u32 %v587, 16
    %v678 = vrot.slane %v676, 5
    %v679 = vshll.u32 %v587, 16
    %v681 = vrot.slane %v679, 6
    %v682 = vor.u32 %v678, %v681
    %v683 = vsel %vm593, %v674, %v682
    %v685 = vshrl.u32 %v415, 16
    %v687 = vrot.slane %v685, 5
    %v688 = vshll.u32 %v415, 16
    %v690 = vrot.slane %v688, 6
    %v691 = vor.u32 %v687, %v690
    %v692 = vrot.slane %v691, 4
    %v694 = vshrl.u32 %v588, 16
    %v696 = vrot.slane %v694, 5
    %v697 = vshll.u32 %v588, 16
    %v699 = vrot.slane %v697, 6
    %v700 = vor.u32 %v696, %v699
    %v701 = vsel %vm593, %v692, %v700
    %v703 = vshrl.u32 %v416, 16
    %v705 = vrot.slane %v703, 5
    %v706 = vshll.u32 %v416, 16
    %v708 = vrot.slane %v706, 6
    %v709 = vor.u32 %v705, %v708
    %v710 = vrot.slane %v709, 4
    %v712 = vshrl.u32 %v589, 16
    %v714 = vrot.slane %v712, 5
    %v715 = vshll.u32 %v589, 16
    %v717 = vrot.slane %v715, 6
    %v718 = vor.u32 %v714, %v717
    %v719 = vsel %vm593, %v710, %v718
    %v721 = vshrl.u32 %v417, 16
    %v723 = vrot.slane %v721, 5
    %v724 = vshll.u32 %v417, 16
    %v726 = vrot.slane %v724, 6
    %v727 = vor.u32 %v723, %v726
    %v728 = vrot.slane %v727, 4
    %v730 = vshrl.u32 %v590, 16
    %v732 = vrot.slane %v730, 5
    %v733 = vshll.u32 %v590, 16
    %v735 = vrot.slane %v733, 6
    %v736 = vor.u32 %v732, %v735
    %v737 = vsel %vm593, %v728, %v736
    %s738 = scalar_lea.vmem %s1, 48
    %v739 = vld [vmem:[%s738] sm:$0xf]
    %v740 = vld [vmem:[%s738 + $0x4] sm:$0xf]
    %v741 = vld [vmem:[%s738 + $0x8] sm:$0xf]
    %v742 = vld [vmem:[%s738 + $0xc] sm:$0xf]
    %v743 = vunpack.c.l.b16 %v611
    %v744 = vunpack.c.l.b16 %v629
    %v745 = vunpack.c.l.b16 %v647
    %v746 = vunpack.c.l.b16 %v665
    %v747 = vunpack.c.l.b16 %v683
    %v748 = vunpack.c.l.b16 %v701
    %v749 = vunpack.c.l.b16 %v719
    %v750 = vunpack.c.l.b16 %v737
    %v751 = vpack.c.b16 %v744, %v743
    %v752 = vpack.c.b16 %v746, %v745
    %v753 = vpack.c.b16 %v748, %v747
    %v754 = vpack.c.b16 %v750, %v749
    %v759 = vunpack.c.l.b16 %v739
    %v760 = vunpack.c.l.b16 %v740
    %v761 = vunpack.c.l.b16 %v741
    %v762 = vunpack.c.l.b16 %v742
    %v763 = vpack.c.b16 %v760, %v759
    %v764 = vpack.c.b16 %v762, %v761
    %v768 = vsel %vm223, %v751, 0
    %v771 = vsel %vm223, %v752, 0
    %v774 = vsel %vm223, %v753, 0
    %v777 = vsel %vm223, %v754, 0
    %779 = vmatprep.subr.bf16.mxu0 0
    %780 = vmatpush1.bf16.msra.mxu0 %v763
    %781 = vmatprep.subr.bf16.mxu0 0
    %782 = vmatpush1.bf16.msra.mxu0 %v764
    %783 = vmatprep.subr.bf16.mxu0 0
    %784 = vmatpush1.bf16.msra.mxu0 0
    %785 = vmatprep.subr.bf16.mxu0 0
    %786 = vmatpush1.bf16.msra.mxu0 0
    %787 = vmatprep.subr.bf16.mxu0 0
    %788 = vmatpush1.bf16.msra.mxu0 0
    %789 = vmatprep.subr.bf16.mxu0 0
    %790 = vmatpush1.bf16.msra.mxu0 0
    %791 = vmatprep.subr.bf16.mxu0 0
    %792 = vmatpush1.bf16.msra.mxu0 0
    %793 = vmatprep.subr.bf16.mxu0 0
    %794 = vmatpush1.bf16.msra.mxu0 0
    %795 = vmatprep.subr.bf16.mxu0 0
    %796 = vmatpush1.bf16.msra.mxu0 0
    %797 = vmatprep.subr.bf16.mxu0 0
    %798 = vmatpush1.bf16.msra.mxu0 0
    %799 = vmatprep.subr.bf16.mxu0 0
    %800 = vmatpush1.bf16.msra.mxu0 0
    %801 = vmatprep.subr.bf16.mxu0 0
    %802 = vmatpush1.bf16.msra.mxu0 0
    %803 = vmatprep.subr.bf16.mxu0 0
    %804 = vmatpush1.bf16.msra.mxu0 0
    %805 = vmatprep.subr.bf16.mxu0 0
    %806 = vmatpush1.bf16.msra.mxu0 0
    %807 = vmatprep.subr.bf16.mxu0 0
    %808 = vmatpush1.bf16.msra.mxu0 0
    %809 = vmatprep.subr.bf16.mxu0 0
    %810 = vmatpush1.bf16.msra.mxu0 0
    %811 = vmatprep.mubr.bf16.mxu0 0
    %812 = vmatmul.mubr.bf16.gmra.mrb[0].mxu0 %v768
    %v813 = vpop.f32.mrb[0].mxu0
    %v814 = vadd.f32 0.0, %v813
    %v815 = vpop.f32.mrb[0].mxu0
    %v816 = vpop.f32.mrb[0].mxu0
    %v817 = vadd.f32 0.0, %v816
    %v818 = vpop.f32.mrb[0].mxu0
    %819 = vmatprep.mubr.bf16.mxu0 0
    %820 = vmatmul.mubr.bf16.gmra.mrb[0].mxu0 %v771
    %v821 = vpop.f32.mrb[0].mxu0
    %v822 = vadd.f32 0.0, %v821
    %v823 = vpop.f32.mrb[0].mxu0
    %v824 = vpop.f32.mrb[0].mxu0
    %v825 = vadd.f32 0.0, %v824
    %v826 = vpop.f32.mrb[0].mxu0
    %827 = vmatprep.mubr.bf16.mxu0 0
    %828 = vmatmul.mubr.bf16.gmra.mrb[0].mxu0 %v774
    %v829 = vpop.f32.mrb[0].mxu0
    %v830 = vadd.f32 0.0, %v829
    %v831 = vpop.f32.mrb[0].mxu0
    %v832 = vpop.f32.mrb[0].mxu0
    %v833 = vadd.f32 0.0, %v832
    %v834 = vpop.f32.mrb[0].mxu0
    %835 = vmatprep.mubr.bf16.mxu0 0
    %836 = vmatmul.mubr.bf16.gmra.mrb[0].mxu0 %v777
    %v837 = vpop.f32.mrb[0].mxu0
    %v838 = vadd.f32 0.0, %v837
    %v839 = vpop.f32.mrb[0].mxu0
    %v840 = vpop.f32.mrb[0].mxu0
    %v841 = vadd.f32 0.0, %v840
    %v842 = vpop.f32.mrb[0].mxu0
    %843 = vdwg.mxu0
    %v844 = vadd.f32 %v575, %v814
    %v845 = vadd.f32 %v576, %v817
    %v846 = vadd.f32 %v577, %v822
    %v847 = vadd.f32 %v578, %v825
    %v848 = vadd.f32 %v579, %v830
    %v849 = vadd.f32 %v580, %v833
    %v850 = vadd.f32 %v581, %v838
    %v851 = vadd.f32 %v582, %v841
    %v852 = vld [vmem:[%s0] sm:$0xc]
    %v853 = vld [vmem:[%s0 + $0x8] sm:$0xc]
    %v854 = vld [vmem:[%s0 + $0x10] sm:$0xc]
    %v855 = vld [vmem:[%s0 + $0x18] sm:$0xc]
    %v856 = vld [vmem:[%s0 + $0x20] sm:$0xc]
    %v857 = vld [vmem:[%s0 + $0x28] sm:$0xc]
    %v858 = vld [vmem:[%s0 + $0x30] sm:$0xc]
    %v859 = vld [vmem:[%s0 + $0x38] sm:$0xc]
    %vm876 = vcmask 1041408
    %vm877 = vcmask 1045508
    %vm878 = vmor %vm876, %vm877
    %v879 = vrot.slane %v852, 6
    %v880 = vrot.slane %v879, 4
    %v881 = vrot.slane %v583, 6
    %v882 = vsel %vm878, %v880, %v881
    %v883 = vrot.slane %v853, 6
    %v884 = vrot.slane %v883, 4
    %v885 = vrot.slane %v584, 6
    %v886 = vsel %vm878, %v884, %v885
    %v887 = vrot.slane %v854, 6
    %v888 = vrot.slane %v887, 4
    %v889 = vrot.slane %v585, 6
    %v890 = vsel %vm878, %v888, %v889
    %v891 = vrot.slane %v855, 6
    %v892 = vrot.slane %v891, 4
    %v893 = vrot.slane %v586, 6
    %v894 = vsel %vm878, %v892, %v893
    %v895 = vrot.slane %v856, 6
    %v896 = vrot.slane %v895, 4
    %v897 = vrot.slane %v587, 6
    %v898 = vsel %vm878, %v896, %v897
    %v899 = vrot.slane %v857, 6
    %v900 = vrot.slane %v899, 4
    %v901 = vrot.slane %v588, 6
    %v902 = vsel %vm878, %v900, %v901
    %v903 = vrot.slane %v858, 6
    %v904 = vrot.slane %v903, 4
    %v905 = vrot.slane %v589, 6
    %v906 = vsel %vm878, %v904, %v905
    %v907 = vrot.slane %v859, 6
    %v908 = vrot.slane %v907, 4
    %v909 = vrot.slane %v590, 6
    %v910 = vsel %vm878, %v908, %v909
    %s911 = scalar_lea.vmem %s1, 64
    %v912 = vld [vmem:[%s911] sm:$0xf]
    %v913 = vld [vmem:[%s911 + $0x4] sm:$0xf]
    %v914 = vld [vmem:[%s911 + $0x8] sm:$0xf]
    %v915 = vld [vmem:[%s911 + $0xc] sm:$0xf]
    %v916 = vunpack.c.l.b16 %v882
    %v917 = vunpack.c.l.b16 %v886
    %v918 = vunpack.c.l.b16 %v890
    %v919 = vunpack.c.l.b16 %v894
    %v920 = vunpack.c.l.b16 %v898
    %v921 = vunpack.c.l.b16 %v902
    %v922 = vunpack.c.l.b16 %v906
    %v923 = vunpack.c.l.b16 %v910
    %v924 = vpack.c.b16 %v917, %v916
    %v925 = vpack.c.b16 %v919, %v918
    %v926 = vpack.c.b16 %v921, %v920
    %v927 = vpack.c.b16 %v923, %v922
    %v932 = vunpack.c.l.b16 %v912
    %v933 = vunpack.c.l.b16 %v913
    %v934 = vunpack.c.l.b16 %v914
    %v935 = vunpack.c.l.b16 %v915
    %v936 = vpack.c.b16 %v933, %v932
    %v937 = vpack.c.b16 %v935, %v934
    %v941 = vsel %vm223, %v924, 0
    %v944 = vsel %vm223, %v925, 0
    %v947 = vsel %vm223, %v926, 0
    %v950 = vsel %vm223, %v927, 0
    %952 = vmatprep.subr.bf16.mxu0 0
    %953 = vmatpush1.bf16.msra.mxu0 %v936
    %954 = vmatprep.subr.bf16.mxu0 0
    %955 = vmatpush1.bf16.msra.mxu0 %v937
    %956 = vmatprep.subr.bf16.mxu0 0
    %957 = vmatpush1.bf16.msra.mxu0 0
    %958 = vmatprep.subr.bf16.mxu0 0
    %959 = vmatpush1.bf16.msra.mxu0 0
    %960 = vmatprep.subr.bf16.mxu0 0
    %961 = vmatpush1.bf16.msra.mxu0 0
    %962 = vmatprep.subr.bf16.mxu0 0
    %963 = vmatpush1.bf16.msra.mxu0 0
    %964 = vmatprep.subr.bf16.mxu0 0
    %965 = vmatpush1.bf16.msra.mxu0 0
    %966 = vmatprep.subr.bf16.mxu0 0
    %967 = vmatpush1.bf16.msra.mxu0 0
    %968 = vmatprep.subr.bf16.mxu0 0
    %969 = vmatpush1.bf16.msra.mxu0 0
    %970 = vmatprep.subr.bf16.mxu0 0
    %971 = vmatpush1.bf16.msra.mxu0 0
    %972 = vmatprep.subr.bf16.mxu0 0
    %973 = vmatpush1.bf16.msra.mxu0 0
    %974 = vmatprep.subr.bf16.mxu0 0
    %975 = vmatpush1.bf16.msra.mxu0 0
    %976 = vmatprep.subr.bf16.mxu0 0
    %977 = vmatpush1.bf16.msra.mxu0 0
    %978 = vmatprep.subr.bf16.mxu0 0
    %979 = vmatpush1.bf16.msra.mxu0 0
    %980 = vmatprep.subr.bf16.mxu0 0
    %981 = vmatpush1.bf16.msra.mxu0 0
    %982 = vmatprep.subr.bf16.mxu0 0
    %983 = vmatpush1.bf16.msra.mxu0 0
    %984 = vmatprep.mubr.bf16.mxu0 0
    %985 = vmatmul.mubr.bf16.gmra.mrb[0].mxu0 %v941
    %v986 = vpop.f32.mrb[0].mxu0
    %v987 = vadd.f32 0.0, %v986
    %v988 = vpop.f32.mrb[0].mxu0
    %v989 = vpop.f32.mrb[0].mxu0
    %v990 = vadd.f32 0.0, %v989
    %v991 = vpop.f32.mrb[0].mxu0
    %992 = vmatprep.mubr.bf16.mxu0 0
    %993 = vmatmul.mubr.bf16.gmra.mrb[0].mxu0 %v944
    %v994 = vpop.f32.mrb[0].mxu0
    %v995 = vadd.f32 0.0, %v994
    %v996 = vpop.f32.mrb[0].mxu0
    %v997 = vpop.f32.mrb[0].mxu0
    %v998 = vadd.f32 0.0, %v997
    %v999 = vpop.f32.mrb[0].mxu0
    %1000 = vmatprep.mubr.bf16.mxu0 0
    %1001 = vmatmul.mubr.bf16.gmra.mrb[0].mxu0 %v947
    %v1002 = vpop.f32.mrb[0].mxu0
    %v1003 = vadd.f32 0.0, %v1002
    %v1004 = vpop.f32.mrb[0].mxu0
    %v1005 = vpop.f32.mrb[0].mxu0
    %v1006 = vadd.f32 0.0, %v1005
    %v1007 = vpop.f32.mrb[0].mxu0
    %1008 = vmatprep.mubr.bf16.mxu0 0
    %1009 = vmatmul.mubr.bf16.gmra.mrb[0].mxu0 %v950
    %v1010 = vpop.f32.mrb[0].mxu0
    %v1011 = vadd.f32 0.0, %v1010
    %v1012 = vpop.f32.mrb[0].mxu0
    %v1013 = vpop.f32.mrb[0].mxu0
    %v1014 = vadd.f32 0.0, %v1013
    %v1015 = vpop.f32.mrb[0].mxu0
    %1016 = vdwg.mxu0
    %v1017 = vadd.f32 %v844, %v987
    %v1018 = vadd.f32 %v845, %v990
    %v1019 = vadd.f32 %v846, %v995
    %v1020 = vadd.f32 %v847, %v998
    %v1021 = vadd.f32 %v848, %v1003
    %v1022 = vadd.f32 %v849, %v1006
    %v1023 = vadd.f32 %v850, %v1011
    %v1024 = vadd.f32 %v851, %v1014
    %v1025 = vld [vmem:[%s2] sm:$0x1]
    %v1027 = vlaneseq
    %v1028 = vshrl.u32 %v1027, 7
    %v1029 = vsub.s32 0, %v1028
    %v1030 = vrot.slane %v1025, %v1029
    %v1032 = vadd.f32 %v1017, %v1030
    %v1033 = vadd.f32 %v1018, %v1030
    %v1034 = vadd.f32 %v1019, %v1030
    %v1035 = vadd.f32 %v1020, %v1030
    %v1036 = vadd.f32 %v1021, %v1030
    %v1037 = vadd.f32 %v1022, %v1030
    %v1038 = vadd.f32 %v1023, %v1030
    %v1039 = vadd.f32 %v1024, %v1030
    %v1040 = vmul.f32 %v1032, 0.1
    %v1041 = vmul.f32 %v1033, 0.1
    %v1042 = vmul.f32 %v1034, 0.1
    %v1043 = vmul.f32 %v1035, 0.1
    %v1044 = vmul.f32 %v1036, 0.1
    %v1045 = vmul.f32 %v1037, 0.1
    %v1046 = vmul.f32 %v1038, 0.1
    %v1047 = vmul.f32 %v1039, 0.1
    %v1048 = vmax.f32 %v1032, %v1040
    %v1049 = vmax.f32 %v1033, %v1041
    %v1050 = vmax.f32 %v1034, %v1042
    %v1051 = vmax.f32 %v1035, %v1043
    %v1052 = vmax.f32 %v1036, %v1044
    %v1053 = vmax.f32 %v1037, %v1045
    %v1054 = vmax.f32 %v1038, %v1046
    %v1055 = vmax.f32 %v1039, %v1047
    %v1056 = vld [vmem:[%s3] sm:$0xff]
    %v1057 = vadd.f32 %v1048, %v1056
    %v1058 = vadd.f32 %v1049, %v1056
    %v1059 = vadd.f32 %v1050, %v1056
    %v1060 = vadd.f32 %v1051, %v1056
    %v1061 = vadd.f32 %v1052, %v1056
    %v1062 = vadd.f32 %v1053, %v1056
    %v1063 = vadd.f32 %v1054, %v1056
    %v1064 = vadd.f32 %v1055, %v1056
    %v1065 = vrot.slane %v1057, 4
    %v1066 = vmax.f32 %v1057, %v1065
    %v1067 = vrot.slane %v1066, 2
    %v1068 = vmax.f32 %v1066, %v1067
    %v1069 = vrot.slane %v1068, 1
    %v1070 = vmax.f32 %v1068, %v1069
    %v1071 = vrot.slane %v1058, 4
    %v1072 = vmax.f32 %v1058, %v1071
    %v1073 = vrot.slane %v1072, 2
    %v1074 = vmax.f32 %v1072, %v1073
    %v1075 = vrot.slane %v1074, 1
    %v1076 = vmax.f32 %v1074, %v1075
    %v1077 = vrot.slane %v1059, 4
    %v1078 = vmax.f32 %v1059, %v1077
    %v1079 = vrot.slane %v1078, 2
    %v1080 = vmax.f32 %v1078, %v1079
    %v1081 = vrot.slane %v1080, 1
    %v1082 = vmax.f32 %v1080, %v1081
    %v1083 = vrot.slane %v1060, 4
    %v1084 = vmax.f32 %v1060, %v1083
    %v1085 = vrot.slane %v1084, 2
    %v1086 = vmax.f32 %v1084, %v1085
    %v1087 = vrot.slane %v1086, 1
    %v1088 = vmax.f32 %v1086, %v1087
    %v1089 = vrot.slane %v1061, 4
    %v1090 = vmax.f32 %v1061, %v1089
    %v1091 = vrot.slane %v1090, 2
    %v1092 = vmax.f32 %v1090, %v1091
    %v1093 = vrot.slane %v1092, 1
    %v1094 = vmax.f32 %v1092, %v1093
    %v1095 = vrot.slane %v1062, 4
    %v1096 = vmax.f32 %v1062, %v1095
    %v1097 = vrot.slane %v1096, 2
    %v1098 = vmax.f32 %v1096, %v1097
    %v1099 = vrot.slane %v1098, 1
    %v1100 = vmax.f32 %v1098, %v1099
    %v1101 = vrot.slane %v1063, 4
    %v1102 = vmax.f32 %v1063, %v1101
    %v1103 = vrot.slane %v1102, 2
    %v1104 = vmax.f32 %v1102, %v1103
    %v1105 = vrot.slane %v1104, 1
    %v1106 = vmax.f32 %v1104, %v1105
    %v1107 = vrot.slane %v1064, 4
    %v1108 = vmax.f32 %v1064, %v1107
    %v1109 = vrot.slane %v1108, 2
    %v1110 = vmax.f32 %v1108, %v1109
    %v1111 = vrot.slane %v1110, 1
    %v1112 = vmax.f32 %v1110, %v1111
    %v1113 = vpack.c.bf16 %v1070, %v1070
    %v1114 = vpack.c.bf16 %v1076, %v1076
    %v1115 = vpack.c.bf16 %v1082, %v1082
    %v1116 = vpack.c.bf16 %v1088, %v1088
    %v1117 = vpack.c.bf16 %v1094, %v1094
    %v1118 = vpack.c.bf16 %v1100, %v1100
    %v1119 = vpack.c.bf16 %v1106, %v1106
    %v1120 = vpack.c.bf16 %v1112, %v1112
    %v1121 = vld [vmem:[#allocation2] sm:$0xf]
    %v1122 = vld [vmem:[#allocation2 + $0x4] sm:$0xf]
    %v1123 = vld [vmem:[#allocation2 + $0x8] sm:$0xf]
    %v1124 = vld [vmem:[#allocation2 + $0xc] sm:$0xf]
    %v1125 = vld [vmem:[#allocation2 + $0x10] sm:$0xf]
    %v1126 = vld [vmem:[#allocation2 + $0x14] sm:$0xf]
    %v1127 = vld [vmem:[#allocation2 + $0x18] sm:$0xf]
    %v1128 = vld [vmem:[#allocation2 + $0x1c] sm:$0xf]
    %v1129 = vld [vmem:[#allocation2 + $0x20] sm:$0xf]
    %v1130 = vld [vmem:[#allocation2 + $0x24] sm:$0xf]
    %v1131 = vld [vmem:[#allocation2 + $0x28] sm:$0xf]
    %v1132 = vld [vmem:[#allocation2 + $0x2c] sm:$0xf]
    %v1133 = vld [vmem:[#allocation2 + $0x30] sm:$0xf]
    %v1134 = vld [vmem:[#allocation2 + $0x34] sm:$0xf]
    %v1135 = vld [vmem:[#allocation2 + $0x38] sm:$0xf]
    %v1136 = vld [vmem:[#allocation2 + $0x3c] sm:$0xf]
    %v1137 = vld [vmem:[%s5] sm:$0x1]
    %v1139 = vlaneseq
    %v1140 = vshrl.u32 %v1139, 7
    %v1141 = vsub.s32 0, %v1140
    %v1142 = vrot.slane %v1137, %v1141
    %v1152 = vunpack.c.l.b16 %v1113
    %v1153 = vunpack.c.l.b16 %v1114
    %v1154 = vunpack.c.l.b16 %v1115
    %v1155 = vunpack.c.l.b16 %v1116
    %v1156 = vunpack.c.l.b16 %v1117
    %v1157 = vunpack.c.l.b16 %v1118
    %v1158 = vunpack.c.l.b16 %v1119
    %v1159 = vunpack.c.l.b16 %v1120
    %vm1160 = vcmask 1041409
    %v1161 = vsel %vm1160, %v1153, %v1152
    %vm1162 = vcmask 1042434
    %v1163 = vsel %vm1162, %v1154, %v1161
    %vm1164 = vcmask 1043459
    %v1165 = vsel %vm1164, %v1155, %v1163
    %vm1166 = vcmask 1044484
    %v1167 = vsel %vm1166, %v1156, %v1165
    %vm1168 = vcmask 1045509
    %v1169 = vsel %vm1168, %v1157, %v1167
    %vm1170 = vcmask 1046534
    %v1171 = vsel %vm1170, %v1158, %v1169
    %vm1172 = vcmask 1047559
    %v1173 = vsel %vm1172, %v1159, %v1171
    %v1174 = vpack.c.b16 %v1173, %v1173
    %v1192 = vunpack.c.l.b16 %v1121
    %v1193 = vunpack.c.l.b16 %v1122
    %v1194 = vunpack.c.l.b16 %v1123
    %v1195 = vunpack.c.l.b16 %v1124
    %v1196 = vunpack.c.l.b16 %v1125
    %v1197 = vunpack.c.l.b16 %v1126
    %v1198 = vunpack.c.l.b16 %v1127
    %v1199 = vunpack.c.l.b16 %v1128
    %v1200 = vunpack.c.l.b16 %v1129
    %v1201 = vunpack.c.l.b16 %v1130
    %v1202 = vunpack.c.l.b16 %v1131
    %v1203 = vunpack.c.l.b16 %v1132
    %v1204 = vunpack.c.l.b16 %v1133
    %v1205 = vunpack.c.l.b16 %v1134
    %v1206 = vunpack.c.l.b16 %v1135
    %v1207 = vunpack.c.l.b16 %v1136
    %v1208 = vpack.c.b16 %v1193, %v1192
    %v1209 = vpack.c.b16 %v1195, %v1194
    %v1210 = vpack.c.b16 %v1197, %v1196
    %v1211 = vpack.c.b16 %v1199, %v1198
    %v1212 = vpack.c.b16 %v1201, %v1200
    %v1213 = vpack.c.b16 %v1203, %v1202
    %v1214 = vpack.c.b16 %v1205, %v1204
    %v1215 = vpack.c.b16 %v1207, %v1206
    %1224 = vmatprep.subr.bf16.mxu0 0
    %1225 = vmatpush1.bf16.msra.mxu0 %v1208
    %1226 = vmatprep.subr.bf16.mxu0 0
    %1227 = vmatpush1.bf16.msra.mxu0 %v1209
    %1228 = vmatprep.subr.bf16.mxu0 0
    %1229 = vmatpush1.bf16.msra.mxu0 %v1210
    %1230 = vmatprep.subr.bf16.mxu0 0
    %1231 = vmatpush1.bf16.msra.mxu0 %v1211
    %1232 = vmatprep.subr.bf16.mxu0 0
    %1233 = vmatpush1.bf16.msra.mxu0 %v1212
    %1234 = vmatprep.subr.bf16.mxu0 0
    %1235 = vmatpush1.bf16.msra.mxu0 %v1213
    %1236 = vmatprep.subr.bf16.mxu0 0
    %1237 = vmatpush1.bf16.msra.mxu0 %v1214
    %1238 = vmatprep.subr.bf16.mxu0 0
    %1239 = vmatpush1.bf16.msra.mxu0 %v1215
    %1240 = vmatprep.subr.bf16.mxu0 0
    %1241 = vmatpush1.bf16.msra.mxu0 0
    %1242 = vmatprep.subr.bf16.mxu0 0
    %1243 = vmatpush1.bf16.msra.mxu0 0
    %1244 = vmatprep.subr.bf16.mxu0 0
    %1245 = vmatpush1.bf16.msra.mxu0 0
    %1246 = vmatprep.subr.bf16.mxu0 0
    %1247 = vmatpush1.bf16.msra.mxu0 0
    %1248 = vmatprep.subr.bf16.mxu0 0
    %1249 = vmatpush1.bf16.msra.mxu0 0
    %1250 = vmatprep.subr.bf16.mxu0 0
    %1251 = vmatpush1.bf16.msra.mxu0 0
    %1252 = vmatprep.subr.bf16.mxu0 0
    %1253 = vmatpush1.bf16.msra.mxu0 0
    %1254 = vmatprep.subr.bf16.mxu0 0
    %1255 = vmatpush1.bf16.msra.mxu0 0
    %1256 = vmatprep.mubr.bf16.mxu0 0
    %1257 = vmatmul.mubr.bf16.gmra.mrb[0].mxu0 %v1174
    %v1258 = vpop.f32.mrb[0].mxu0
    %v1259 = vadd.f32 %v1142, %v1258
    %v1260 = vpop.f32.mrb[0].mxu0
    %v1261 = vpop.f32.mrb[0].mxu0
    %v1262 = vpop.f32.mrb[0].mxu0
    %1263 = vdwg.mxu0
    %v1264 = vmul.f32 %v1259, 0.1
    %v1265 = vmax.f32 %v1259, %v1264
    %v1266 = vpack.c.bf16 %v1265, %v1265
    %v1267 = vld [vmem:[#allocation5] sm:$0xf]
    %v1268 = vld [vmem:[#allocation5 + $0x4] sm:$0xf]
    %v1269 = vld [vmem:[#allocation5 + $0x8] sm:$0xf]
    %v1270 = vld [vmem:[#allocation5 + $0xc] sm:$0xf]
    %v1271 = vld [vmem:[#allocation5 + $0x10] sm:$0xf]
    %v1272 = vld [vmem:[#allocation5 + $0x14] sm:$0xf]
    %v1273 = vld [vmem:[#allocation5 + $0x18] sm:$0xf]
    %v1274 = vld [vmem:[#allocation5 + $0x1c] sm:$0xf]
    %v1275 = vld [vmem:[#allocation5 + $0x20] sm:$0xf]
    %v1276 = vld [vmem:[#allocation5 + $0x24] sm:$0xf]
    %v1277 = vld [vmem:[#allocation5 + $0x28] sm:$0xf]
    %v1278 = vld [vmem:[#allocation5 + $0x2c] sm:$0xf]
    %v1279 = vld [vmem:[#allocation5 + $0x30] sm:$0xf]
    %v1280 = vld [vmem:[#allocation5 + $0x34] sm:$0xf]
    %v1281 = vld [vmem:[#allocation5 + $0x38] sm:$0xf]
    %v1282 = vld [vmem:[#allocation5 + $0x3c] sm:$0xf]
    %v1283 = vld [vmem:[%s7] sm:$0x1]
    %v1285 = vlaneseq
    %v1286 = vshrl.u32 %v1285, 7
    %v1287 = vsub.s32 0, %v1286
    %v1288 = vrot.slane %v1283, %v1287
    %v1306 = vunpack.c.l.b16 %v1267
    %v1307 = vunpack.c.l.b16 %v1268
    %v1308 = vunpack.c.l.b16 %v1269
    %v1309 = vunpack.c.l.b16 %v1270
    %v1310 = vunpack.c.l.b16 %v1271
    %v1311 = vunpack.c.l.b16 %v1272
    %v1312 = vunpack.c.l.b16 %v1273
    %v1313 = vunpack.c.l.b16 %v1274
    %v1314 = vunpack.c.l.b16 %v1275
    %v1315 = vunpack.c.l.b16 %v1276
    %v1316 = vunpack.c.l.b16 %v1277
    %v1317 = vunpack.c.l.b16 %v1278
    %v1318 = vunpack.c.l.b16 %v1279
    %v1319 = vunpack.c.l.b16 %v1280
    %v1320 = vunpack.c.l.b16 %v1281
    %v1321 = vunpack.c.l.b16 %v1282
    %v1322 = vpack.c.b16 %v1307, %v1306
    %v1323 = vpack.c.b16 %v1309, %v1308
    %v1324 = vpack.c.b16 %v1311, %v1310
    %v1325 = vpack.c.b16 %v1313, %v1312
    %v1326 = vpack.c.b16 %v1315, %v1314
    %v1327 = vpack.c.b16 %v1317, %v1316
    %v1328 = vpack.c.b16 %v1319, %v1318
    %v1329 = vpack.c.b16 %v1321, %v1320
    %1338 = vmatprep.subr.bf16.mxu0 0
    %1339 = vmatpush1.bf16.msra.mxu0 %v1322
    %1340 = vmatprep.subr.bf16.mxu0 0
    %1341 = vmatpush1.bf16.msra.mxu0 %v1323
    %1342 = vmatprep.subr.bf16.mxu0 0
    %1343 = vmatpush1.bf16.msra.mxu0 %v1324
    %1344 = vmatprep.subr.bf16.mxu0 0
    %1345 = vmatpush1.bf16.msra.mxu0 %v1325
    %1346 = vmatprep.subr.bf16.mxu0 0
    %1347 = vmatpush1.bf16.msra.mxu0 %v1326
    %1348 = vmatprep.subr.bf16.mxu0 0
    %1349 = vmatpush1.bf16.msra.mxu0 %v1327
    %1350 = vmatprep.subr.bf16.mxu0 0
    %1351 = vmatpush1.bf16.msra.mxu0 %v1328
    %1352 = vmatprep.subr.bf16.mxu0 0
    %1353 = vmatpush1.bf16.msra.mxu0 %v1329
    %1354 = vmatprep.subr.bf16.mxu0 0
    %1355 = vmatpush1.bf16.msra.mxu0 0
    %1356 = vmatprep.subr.bf16.mxu0 0
    %1357 = vmatpush1.bf16.msra.mxu0 0
    %1358 = vmatprep.subr.bf16.mxu0 0
    %1359 = vmatpush1.bf16.msra.mxu0 0
    %1360 = vmatprep.subr.bf16.mxu0 0
    %1361 = vmatpush1.bf16.msra.mxu0 0
    %1362 = vmatprep.subr.bf16.mxu0 0
    %1363 = vmatpush1.bf16.msra.mxu0 0
    %1364 = vmatprep.subr.bf16.mxu0 0
    %1365 = vmatpush1.bf16.msra.mxu0 0
    %1366 = vmatprep.subr.bf16.mxu0 0
    %1367 = vmatpush1.bf16.msra.mxu0 0
    %1368 = vmatprep.subr.bf16.mxu0 0
    %1369 = vmatpush1.bf16.msra.mxu0 0
    %1370 = vmatprep.mubr.bf16.mxu0 0
    %1371 = vmatmul.mubr.bf16.gmra.mrb[0].mxu0 %v1266
    %v1372 = vpop.f32.mrb[0].mxu0
    %v1373 = vadd.f32 %v1288, %v1372
    %v1374 = vpop.f32.mrb[0].mxu0
    %v1375 = vpop.f32.mrb[0].mxu0
    %v1376 = vpop.f32.mrb[0].mxu0
    %1377 = vdwg.mxu0
    %1378 = vst [vmem:[#allocation7] sm:$0xff] %v1373
    // Predicated region
    $region42: #{tpu_custom_call.1} parent=1 // pred_check
      _
    $region43: #{tpu_custom_call.1} parent=1 // pred_check_branch
      %1380 = sbr.rel (0) target = $region45
    $region44: #{tpu_custom_call.1} parent=1 // pred_region
      %s1382 = ssub.s32 128, 128
      %1383 = vsyncadd [#allocation4], %s1382
      %s1385 = sshll.u32 [#allocation7], 4
      %s1386 = int_to_ptr.vmem [resolvable:$true] %s1385
      %1388 = dma.vmem_to_hbm [thread:$0]  %s1386, 128, %s8, [#allocation4]
    $region45: #{tpu_custom_call.1} parent=1 // pred_fallthru
      _
    // Predicated region
    $region46: #{tpu_custom_call.1} parent=1 // pred_check
      _
    $region47: #{tpu_custom_call.1} parent=1 // pred_check_branch
      %1390 = sbr.rel (0) target = $region49
    $region48: #{tpu_custom_call.1} parent=1 // pred_region
      %1391 = dma.done [#allocation4], 128
    $region49: #{tpu_custom_call.1} parent=1 // pred_fallthru
      _
    %1392 = vsyncpa [#allocation3], 1
    %1393 = vsyncpa [#allocation6], 1
    %1394 = vsyncpa [#allocation4], 1

</llo_original>
